<compile_context>
chip_gen: v7x
topology: tpu7x:2x2x1
jax: 0.10.0
libtpu: 0.0.40
codegen_flags: <defaults>
</compile_context>

<pallas_src>
import jax
import jax.numpy as jnp
import numpy as np
from jax.experimental import pallas as pl
from jax.experimental.pallas import tpu as pltpu


# ----------------------------- Pallas kernel ---------------------------------
def make_gru_encoder_kernel(Ts: int, Bp: int, H: int):
    H2 = 2 * H
    H3 = 3 * H

    def kernel(x_ref,        # (Ts*Bp, D)  time-major, batch-padded, flattened
               w_ih_ref,     # (D, 3H)     packed input weights, gate order r|z|n
               w_hh_ref,     # (H, 3H)     packed recurrent weights
               b_i_ref,      # (1, 3H)     packed input-side bias (r/z pre-combined with b_hh)
               b_hn_ref,     # (1, H)      recurrent bias of the n gate (stays inside r * (.))
               h_ref,        # out: (Bp, H) final hidden
               gi_ref):      # scratch: (Ts*Bp, 3H) hoisted input activations
        # --- hoisted packed input matmul for ALL timesteps (bias folded in) ---
        # Written to VMEM scratch so the full-sequence slab is not a live SSA
        # value across the unrolled recurrence (bounds vreg pressure).
        gi_ref[...] = (
            jnp.dot(x_ref[...], w_ih_ref[...], preferred_element_type=jnp.float32)
            + b_i_ref[...]
        )

        w_hh = w_hh_ref[...]
        # Hoist the (1,H)->(Bp,H) broadcast out of the recurrence (no CSE in-loop).
        b_hn = jnp.broadcast_to(b_hn_ref[...], (Bp, H))

        def sigmoid(v):
            # 0.5*(tanh(x/2)+1): one EUP tanh, no full-precision divide on the VALU.
            return 0.5 * (jnp.tanh(0.5 * v) + 1.0)

        # --- peeled t = 0: h0 == 0, so the recurrent matmul is identically 0 ---
        gi0 = gi_ref[pl.ds(0, Bp), :]
        rz0 = sigmoid(gi0[:, 0:H2])                 # packed r|z sigmoid (one EUP push)
        r0 = rz0[:, 0:H]
        z0 = rz0[:, H:H2]
        n0 = jnp.tanh(gi0[:, H2:H3] + r0 * b_hn)
        h = (1.0 - z0) * n0                         # z0 * h0 == 0

        # --- serial recurrence: static trip count -> fully unrolled at trace time ---
        for t in range(1, Ts):
            gi_t = gi_ref[pl.ds(t * Bp, Bp), :]     # static, sublane-aligned (Bp % 8 == 0)
            gh = jnp.dot(h, w_hh, preferred_element_type=jnp.float32)   # single packed (Bp,3H) dot
            rz = sigmoid(gi_t[:, 0:H2] + gh[:, 0:H2])
            r = rz[:, 0:H]
            z = rz[:, H:H2]
            n = jnp.tanh(gi_t[:, H2:H3] + r * (gh[:, H2:H3] + b_hn))
            h = (1.0 - z) * n + z * h

        h_ref[...] = h

    return kernel


# ----------------------------- wrapper ---------------------------------------
def encoder_forward(x, params):
    """x: (T, B, D) time-major (nn.GRU default). Returns hidden of shape (1, B, H)."""
    Ts, B, D = x.shape
    H = params["w_hh"].shape[0]
    Bp = ((B + 7) // 8) * 8            # pad batch to a sublane multiple

    w_ih = params["w_ih"]              # (D, 3H), gate order r, z, n
    w_hh = params["w_hh"]              # (H, 3H)
    b_ih = params["b_ih"]              # (1, 3H)
    b_hh = params["b_hh"]              # (1, 3H)

    # Pre-combine biases: r and z take (b_ih + b_hh); n takes b_ih only (its
    # b_hh part must remain inside r * (W_hn h + b_hn) to match PyTorch).
    b_i = jnp.concatenate(
        [b_ih[:, 0:H] + b_hh[:, 0:H],
         b_ih[:, H:2 * H] + b_hh[:, H:2 * H],
         b_ih[:, 2 * H:3 * H]],
        axis=1,
    )                                   # (1, 3H)
    b_hn = b_hh[:, 2 * H:3 * H]         # (1, H)

    x_p = jnp.pad(x, ((0, 0), (0, Bp - B), (0, 0))).reshape(Ts * Bp, D)

    vmem = pl.BlockSpec(memory_space=pltpu.MemorySpace.VMEM)
    args = (x_p, w_ih, w_hh, b_i, b_hn)

    h = pl.pallas_call(
        make_gru_encoder_kernel(Ts, Bp, H),
        out_shape=jax.ShapeDtypeStruct((Bp, H), jnp.float32),
        in_specs=[vmem] * len(args),
        out_specs=vmem,
        scratch_shapes=[pltpu.VMEM((Ts * Bp, 3 * H), jnp.float32)],
    )(*args)

    return h[None, :B, :]              # (1, B, H) — nn.GRU hidden layout


# ----------------------------- pure-JAX reference -----------------------------
def encoder_reference(x, params):
    H = params["w_hh"].shape[0]
    B = x.shape[1]
    h = jnp.zeros((B, H), jnp.float32)
    for t in range(x.shape[0]):
        gi = x[t] @ params["w_ih"] + params["b_ih"]
        gh = h @ params["w_hh"] + params["b_hh"]
        r = jax.nn.sigmoid(gi[:, 0:H] + gh[:, 0:H])
        z = jax.nn.sigmoid(gi[:, H:2 * H] + gh[:, H:2 * H])
        n = jnp.tanh(gi[:, 2 * H:3 * H] + r * gh[:, 2 * H:3 * H])
        h = (1.0 - z) * n + z * h
    return h[None]


# ----------------------------- main -------------------------------------------
if __name__ == "__main__":
    T = 8        # sequence length
    B = 2        # batch
    D = 16       # input_dim
    H = 32       # hidden_dim

    key = jax.random.PRNGKey(0)
    ks = jax.random.split(key, 8)

    def init(k, shape, scale=0.1):
        return (scale * jax.random.normal(k, shape)).astype(jnp.float32)

    params = {
        "w_ih": init(ks[0], (D, 3 * H)),   # pre-transposed, gate order (r, z, n)
        "w_hh": init(ks[1], (H, 3 * H)),
        "b_ih": init(ks[2], (1, 3 * H)),
        "b_hh": init(ks[3], (1, 3 * H)),
    }
    x = init(ks[4], (T, B, D), scale=1.0)

    out = encoder_forward(x, params)
    out = jax.block_until_ready(out)

    ref = encoder_reference(x, params)
    np.testing.assert_allclose(np.asarray(out), np.asarray(ref), rtol=1e-5, atol=1e-5)

    print("KERNEL_OK")
</pallas_src>

<mosaic_0001>
module attributes {stable_mosaic.version = 11 : i64} {
  func.func @kernel(%arg0: memref<64x16xf32, #tpu.memory_space<vmem>>, %arg1: memref<16x96xf32, #tpu.memory_space<vmem>>, %arg2: memref<32x96xf32, #tpu.memory_space<vmem>>, %arg3: memref<1x96xf32, #tpu.memory_space<vmem>>, %arg4: memref<1x32xf32, #tpu.memory_space<vmem>>, %arg5: memref<8x32xf32, #tpu.memory_space<vmem>>, %arg6: memref<64x96xf32, #tpu.memory_space<vmem>>) attributes {dimension_semantics = [], scalar_prefetch = 0 : i64, scratch_operands = 1 : i64, tpu.core_type = #tpu.core_type<tc>} {
    %c0 = arith.constant 0 : index
    %c0_0 = arith.constant 0 : index
    %0 = vector.load %arg0[%c0, %c0_0] : memref<64x16xf32, #tpu.memory_space<vmem>>, vector<64x16xf32>
    %c0_1 = arith.constant 0 : index
    %c0_2 = arith.constant 0 : index
    %1 = vector.load %arg1[%c0_1, %c0_2] : memref<16x96xf32, #tpu.memory_space<vmem>>, vector<16x96xf32>
    %cst = arith.constant dense<0.000000e+00> : vector<64x96xf32>
    %2 = tpu.matmul %0, %1, %cst {dimension_numbers = #tpu.dot_dimension_numbers<[1], [0], [0], [1], [0, 0, 1, 1], [], []>} : vector<64x16xf32>, vector<16x96xf32>, vector<64x96xf32> -> vector<64x96xf32>
    %c0_3 = arith.constant 0 : index
    %c0_4 = arith.constant 0 : index
    %3 = vector.load %arg3[%c0_3, %c0_4] : memref<1x96xf32, #tpu.memory_space<vmem>>, vector<1x96xf32>
    %4 = vector.broadcast %3 : vector<1x96xf32> to vector<64x96xf32>
    %5 = arith.addf %2, %4 : vector<64x96xf32>
    %c0_5 = arith.constant 0 : index
    %c0_6 = arith.constant 0 : index
    %6 = vector.load %arg6[%c0_5, %c0_6] : memref<64x96xf32, #tpu.memory_space<vmem>>, vector<64x96xf32>
    tpu.vector_store %arg6[%c0_5, %c0_6], %5 {strides = array<i32>} : memref<64x96xf32, #tpu.memory_space<vmem>>, vector<64x96xf32>,
    %c0_7 = arith.constant 0 : index
    %c0_8 = arith.constant 0 : index
    %7 = vector.load %arg2[%c0_7, %c0_8] : memref<32x96xf32, #tpu.memory_space<vmem>>, vector<32x96xf32>
    %c0_9 = arith.constant 0 : index
    %c0_10 = arith.constant 0 : index
    %8 = vector.load %arg4[%c0_9, %c0_10] : memref<1x32xf32, #tpu.memory_space<vmem>>, vector<1x32xf32>
    %9 = vector.shape_cast %8 : vector<1x32xf32> to vector<1x32xf32>
    %10 = vector.broadcast %9 : vector<1x32xf32> to vector<8x32xf32>
    %c0_11 = arith.constant 0 : index
    %c0_12 = arith.constant 0 : index
    %11 = vector.load %arg6[%c0_11, %c0_12] : memref<64x96xf32, #tpu.memory_space<vmem>>, vector<8x96xf32>
    %12 = vector.extract_strided_slice %11 {offsets = [0, 0], sizes = [8, 64], strides = [1, 1]} : vector<8x96xf32> to vector<8x64xf32>
    %cst_13 = arith.constant 5.000000e-01 : f32
    %13 = vector.broadcast %cst_13 : f32 to vector<8x64xf32>
    %14 = arith.mulf %13, %12 : vector<8x64xf32>
    %15 = math.tanh %14 : vector<8x64xf32>
    %cst_14 = arith.constant 1.000000e+00 : f32
    %16 = vector.broadcast %cst_14 : f32 to vector<8x64xf32>
    %17 = arith.addf %15, %16 : vector<8x64xf32>
    %cst_15 = arith.constant 5.000000e-01 : f32
    %18 = vector.broadcast %cst_15 : f32 to vector<8x64xf32>
    %19 = arith.mulf %18, %17 : vector<8x64xf32>
    %20 = vector.extract_strided_slice %19 {offsets = [0, 0], sizes = [8, 32], strides = [1, 1]} : vector<8x64xf32> to vector<8x32xf32>
    %21 = vector.extract_strided_slice %19 {offsets = [0, 32], sizes = [8, 32], strides = [1, 1]} : vector<8x64xf32> to vector<8x32xf32>
    %22 = vector.extract_strided_slice %11 {offsets = [0, 64], sizes = [8, 32], strides = [1, 1]} : vector<8x96xf32> to vector<8x32xf32>
    %23 = arith.mulf %20, %10 : vector<8x32xf32>
    %24 = arith.addf %22, %23 : vector<8x32xf32>
    %25 = math.tanh %24 : vector<8x32xf32>
    %cst_16 = arith.constant 1.000000e+00 : f32
    %26 = vector.broadcast %cst_16 : f32 to vector<8x32xf32>
    %27 = arith.subf %26, %21 : vector<8x32xf32>
    %28 = arith.mulf %27, %25 : vector<8x32xf32>
    %c8 = arith.constant 8 : index
    %c0_17 = arith.constant 0 : index
    %29 = vector.load %arg6[%c8, %c0_17] : memref<64x96xf32, #tpu.memory_space<vmem>>, vector<8x96xf32>
    %cst_18 = arith.constant dense<0.000000e+00> : vector<8x96xf32>
    %30 = tpu.matmul %28, %7, %cst_18 {dimension_numbers = #tpu.dot_dimension_numbers<[1], [0], [0], [1], [0, 0, 1, 1], [], []>} : vector<8x32xf32>, vector<32x96xf32>, vector<8x96xf32> -> vector<8x96xf32>
    %31 = vector.extract_strided_slice %29 {offsets = [0, 0], sizes = [8, 64], strides = [1, 1]} : vector<8x96xf32> to vector<8x64xf32>
    %32 = vector.extract_strided_slice %30 {offsets = [0, 0], sizes = [8, 64], strides = [1, 1]} : vector<8x96xf32> to vector<8x64xf32>
    %33 = arith.addf %31, %32 : vector<8x64xf32>
    %cst_19 = arith.constant 5.000000e-01 : f32
    %34 = vector.broadcast %cst_19 : f32 to vector<8x64xf32>
    %35 = arith.mulf %34, %33 : vector<8x64xf32>
    %36 = math.tanh %35 : vector<8x64xf32>
    %cst_20 = arith.constant 1.000000e+00 : f32
    %37 = vector.broadcast %cst_20 : f32 to vector<8x64xf32>
    %38 = arith.addf %36, %37 : vector<8x64xf32>
    %cst_21 = arith.constant 5.000000e-01 : f32
    %39 = vector.broadcast %cst_21 : f32 to vector<8x64xf32>
    %40 = arith.mulf %39, %38 : vector<8x64xf32>
    %41 = vector.extract_strided_slice %40 {offsets = [0, 0], sizes = [8, 32], strides = [1, 1]} : vector<8x64xf32> to vector<8x32xf32>
    %42 = vector.extract_strided_slice %40 {offsets = [0, 32], sizes = [8, 32], strides = [1, 1]} : vector<8x64xf32> to vector<8x32xf32>
    %43 = vector.extract_strided_slice %29 {offsets = [0, 64], sizes = [8, 32], strides = [1, 1]} : vector<8x96xf32> to vector<8x32xf32>
    %44 = vector.extract_strided_slice %30 {offsets = [0, 64], sizes = [8, 32], strides = [1, 1]} : vector<8x96xf32> to vector<8x32xf32>
    %45 = arith.addf %44, %10 : vector<8x32xf32>
    %46 = arith.mulf %41, %45 : vector<8x32xf32>
    %47 = arith.addf %43, %46 : vector<8x32xf32>
    %48 = math.tanh %47 : vector<8x32xf32>
    %cst_22 = arith.constant 1.000000e+00 : f32
    %49 = vector.broadcast %cst_22 : f32 to vector<8x32xf32>
    %50 = arith.subf %49, %42 : vector<8x32xf32>
    %51 = arith.mulf %50, %48 : vector<8x32xf32>
    %52 = arith.mulf %42, %28 : vector<8x32xf32>
    %53 = arith.addf %51, %52 : vector<8x32xf32>
    %c16 = arith.constant 16 : index
    %c0_23 = arith.constant 0 : index
    %54 = vector.load %arg6[%c16, %c0_23] : memref<64x96xf32, #tpu.memory_space<vmem>>, vector<8x96xf32>
    %cst_24 = arith.constant dense<0.000000e+00> : vector<8x96xf32>
    %55 = tpu.matmul %53, %7, %cst_24 {dimension_numbers = #tpu.dot_dimension_numbers<[1], [0], [0], [1], [0, 0, 1, 1], [], []>} : vector<8x32xf32>, vector<32x96xf32>, vector<8x96xf32> -> vector<8x96xf32>
    %56 = vector.extract_strided_slice %54 {offsets = [0, 0], sizes = [8, 64], strides = [1, 1]} : vector<8x96xf32> to vector<8x64xf32>
    %57 = vector.extract_strided_slice %55 {offsets = [0, 0], sizes = [8, 64], strides = [1, 1]} : vector<8x96xf32> to vector<8x64xf32>
    %58 = arith.addf %56, %57 : vector<8x64xf32>
    %cst_25 = arith.constant 5.000000e-01 : f32
    %59 = vector.broadcast %cst_25 : f32 to vector<8x64xf32>
    %60 = arith.mulf %59, %58 : vector<8x64xf32>
    %61 = math.tanh %60 : vector<8x64xf32>
    %cst_26 = arith.constant 1.000000e+00 : f32
    %62 = vector.broadcast %cst_26 : f32 to vector<8x64xf32>
    %63 = arith.addf %61, %62 : vector<8x64xf32>
    %cst_27 = arith.constant 5.000000e-01 : f32
    %64 = vector.broadcast %cst_27 : f32 to vector<8x64xf32>
    %65 = arith.mulf %64, %63 : vector<8x64xf32>
    %66 = vector.extract_strided_slice %65 {offsets = [0, 0], sizes = [8, 32], strides = [1, 1]} : vector<8x64xf32> to vector<8x32xf32>
    %67 = vector.extract_strided_slice %65 {offsets = [0, 32], sizes = [8, 32], strides = [1, 1]} : vector<8x64xf32> to vector<8x32xf32>
    %68 = vector.extract_strided_slice %54 {offsets = [0, 64], sizes = [8, 32], strides = [1, 1]} : vector<8x96xf32> to vector<8x32xf32>
    %69 = vector.extract_strided_slice %55 {offsets = [0, 64], sizes = [8, 32], strides = [1, 1]} : vector<8x96xf32> to vector<8x32xf32>
    %70 = arith.addf %69, %10 : vector<8x32xf32>
    %71 = arith.mulf %66, %70 : vector<8x32xf32>
    %72 = arith.addf %68, %71 : vector<8x32xf32>
    %73 = math.tanh %72 : vector<8x32xf32>
    %cst_28 = arith.constant 1.000000e+00 : f32
    %74 = vector.broadcast %cst_28 : f32 to vector<8x32xf32>
    %75 = arith.subf %74, %67 : vector<8x32xf32>
    %76 = arith.mulf %75, %73 : vector<8x32xf32>
    %77 = arith.mulf %67, %53 : vector<8x32xf32>
    %78 = arith.addf %76, %77 : vector<8x32xf32>
    %c24 = arith.constant 24 : index
    %c0_29 = arith.constant 0 : index
    %79 = vector.load %arg6[%c24, %c0_29] : memref<64x96xf32, #tpu.memory_space<vmem>>, vector<8x96xf32>
    %cst_30 = arith.constant dense<0.000000e+00> : vector<8x96xf32>
    %80 = tpu.matmul %78, %7, %cst_30 {dimension_numbers = #tpu.dot_dimension_numbers<[1], [0], [0], [1], [0, 0, 1, 1], [], []>} : vector<8x32xf32>, vector<32x96xf32>, vector<8x96xf32> -> vector<8x96xf32>
    %81 = vector.extract_strided_slice %79 {offsets = [0, 0], sizes = [8, 64], strides = [1, 1]} : vector<8x96xf32> to vector<8x64xf32>
    %82 = vector.extract_strided_slice %80 {offsets = [0, 0], sizes = [8, 64], strides = [1, 1]} : vector<8x96xf32> to vector<8x64xf32>
    %83 = arith.addf %81, %82 : vector<8x64xf32>
    %cst_31 = arith.constant 5.000000e-01 : f32
    %84 = vector.broadcast %cst_31 : f32 to vector<8x64xf32>
    %85 = arith.mulf %84, %83 : vector<8x64xf32>
    %86 = math.tanh %85 : vector<8x64xf32>
    %cst_32 = arith.constant 1.000000e+00 : f32
    %87 = vector.broadcast %cst_32 : f32 to vector<8x64xf32>
    %88 = arith.addf %86, %87 : vector<8x64xf32>
    %cst_33 = arith.constant 5.000000e-01 : f32
    %89 = vector.broadcast %cst_33 : f32 to vector<8x64xf32>
    %90 = arith.mulf %89, %88 : vector<8x64xf32>
    %91 = vector.extract_strided_slice %90 {offsets = [0, 0], sizes = [8, 32], strides = [1, 1]} : vector<8x64xf32> to vector<8x32xf32>
    %92 = vector.extract_strided_slice %90 {offsets = [0, 32], sizes = [8, 32], strides = [1, 1]} : vector<8x64xf32> to vector<8x32xf32>
    %93 = vector.extract_strided_slice %79 {offsets = [0, 64], sizes = [8, 32], strides = [1, 1]} : vector<8x96xf32> to vector<8x32xf32>
    %94 = vector.extract_strided_slice %80 {offsets = [0, 64], sizes = [8, 32], strides = [1, 1]} : vector<8x96xf32> to vector<8x32xf32>
    %95 = arith.addf %94, %10 : vector<8x32xf32>
    %96 = arith.mulf %91, %95 : vector<8x32xf32>
    %97 = arith.addf %93, %96 : vector<8x32xf32>
    %98 = math.tanh %97 : vector<8x32xf32>
    %cst_34 = arith.constant 1.000000e+00 : f32
    %99 = vector.broadcast %cst_34 : f32 to vector<8x32xf32>
    %100 = arith.subf %99, %92 : vector<8x32xf32>
    %101 = arith.mulf %100, %98 : vector<8x32xf32>
    %102 = arith.mulf %92, %78 : vector<8x32xf32>
    %103 = arith.addf %101, %102 : vector<8x32xf32>
    %c32 = arith.constant 32 : index
    %c0_35 = arith.constant 0 : index
    %104 = vector.load %arg6[%c32, %c0_35] : memref<64x96xf32, #tpu.memory_space<vmem>>, vector<8x96xf32>
    %cst_36 = arith.constant dense<0.000000e+00> : vector<8x96xf32>
    %105 = tpu.matmul %103, %7, %cst_36 {dimension_numbers = #tpu.dot_dimension_numbers<[1], [0], [0], [1], [0, 0, 1, 1], [], []>} : vector<8x32xf32>, vector<32x96xf32>, vector<8x96xf32> -> vector<8x96xf32>
    %106 = vector.extract_strided_slice %104 {offsets = [0, 0], sizes = [8, 64], strides = [1, 1]} : vector<8x96xf32> to vector<8x64xf32>
    %107 = vector.extract_strided_slice %105 {offsets = [0, 0], sizes = [8, 64], strides = [1, 1]} : vector<8x96xf32> to vector<8x64xf32>
    %108 = arith.addf %106, %107 : vector<8x64xf32>
    %cst_37 = arith.constant 5.000000e-01 : f32
    %109 = vector.broadcast %cst_37 : f32 to vector<8x64xf32>
    %110 = arith.mulf %109, %108 : vector<8x64xf32>
    %111 = math.tanh %110 : vector<8x64xf32>
    %cst_38 = arith.constant 1.000000e+00 : f32
    %112 = vector.broadcast %cst_38 : f32 to vector<8x64xf32>
    %113 = arith.addf %111, %112 : vector<8x64xf32>
    %cst_39 = arith.constant 5.000000e-01 : f32
    %114 = vector.broadcast %cst_39 : f32 to vector<8x64xf32>
    %115 = arith.mulf %114, %113 : vector<8x64xf32>
    %116 = vector.extract_strided_slice %115 {offsets = [0, 0], sizes = [8, 32], strides = [1, 1]} : vector<8x64xf32> to vector<8x32xf32>
    %117 = vector.extract_strided_slice %115 {offsets = [0, 32], sizes = [8, 32], strides = [1, 1]} : vector<8x64xf32> to vector<8x32xf32>
    %118 = vector.extract_strided_slice %104 {offsets = [0, 64], sizes = [8, 32], strides = [1, 1]} : vector<8x96xf32> to vector<8x32xf32>
    %119 = vector.extract_strided_slice %105 {offsets = [0, 64], sizes = [8, 32], strides = [1, 1]} : vector<8x96xf32> to vector<8x32xf32>
    %120 = arith.addf %119, %10 : vector<8x32xf32>
    %121 = arith.mulf %116, %120 : vector<8x32xf32>
    %122 = arith.addf %118, %121 : vector<8x32xf32>
    %123 = math.tanh %122 : vector<8x32xf32>
    %cst_40 = arith.constant 1.000000e+00 : f32
    %124 = vector.broadcast %cst_40 : f32 to vector<8x32xf32>
    %125 = arith.subf %124, %117 : vector<8x32xf32>
    %126 = arith.mulf %125, %123 : vector<8x32xf32>
    %127 = arith.mulf %117, %103 : vector<8x32xf32>
    %128 = arith.addf %126, %127 : vector<8x32xf32>
    %c40 = arith.constant 40 : index
    %c0_41 = arith.constant 0 : index
    %129 = vector.load %arg6[%c40, %c0_41] : memref<64x96xf32, #tpu.memory_space<vmem>>, vector<8x96xf32>
    %cst_42 = arith.constant dense<0.000000e+00> : vector<8x96xf32>
    %130 = tpu.matmul %128, %7, %cst_42 {dimension_numbers = #tpu.dot_dimension_numbers<[1], [0], [0], [1], [0, 0, 1, 1], [], []>} : vector<8x32xf32>, vector<32x96xf32>, vector<8x96xf32> -> vector<8x96xf32>
    %131 = vector.extract_strided_slice %129 {offsets = [0, 0], sizes = [8, 64], strides = [1, 1]} : vector<8x96xf32> to vector<8x64xf32>
    %132 = vector.extract_strided_slice %130 {offsets = [0, 0], sizes = [8, 64], strides = [1, 1]} : vector<8x96xf32> to vector<8x64xf32>
    %133 = arith.addf %131, %132 : vector<8x64xf32>
    %cst_43 = arith.constant 5.000000e-01 : f32
    %134 = vector.broadcast %cst_43 : f32 to vector<8x64xf32>
    %135 = arith.mulf %134, %133 : vector<8x64xf32>
    %136 = math.tanh %135 : vector<8x64xf32>
    %cst_44 = arith.constant 1.000000e+00 : f32
    %137 = vector.broadcast %cst_44 : f32 to vector<8x64xf32>
    %138 = arith.addf %136, %137 : vector<8x64xf32>
    %cst_45 = arith.constant 5.000000e-01 : f32
    %139 = vector.broadcast %cst_45 : f32 to vector<8x64xf32>
    %140 = arith.mulf %139, %138 : vector<8x64xf32>
    %141 = vector.extract_strided_slice %140 {offsets = [0, 0], sizes = [8, 32], strides = [1, 1]} : vector<8x64xf32> to vector<8x32xf32>
    %142 = vector.extract_strided_slice %140 {offsets = [0, 32], sizes = [8, 32], strides = [1, 1]} : vector<8x64xf32> to vector<8x32xf32>
    %143 = vector.extract_strided_slice %129 {offsets = [0, 64], sizes = [8, 32], strides = [1, 1]} : vector<8x96xf32> to vector<8x32xf32>
    %144 = vector.extract_strided_slice %130 {offsets = [0, 64], sizes = [8, 32], strides = [1, 1]} : vector<8x96xf32> to vector<8x32xf32>
    %145 = arith.addf %144, %10 : vector<8x32xf32>
    %146 = arith.mulf %141, %145 : vector<8x32xf32>
    %147 = arith.addf %143, %146 : vector<8x32xf32>
    %148 = math.tanh %147 : vector<8x32xf32>
    %cst_46 = arith.constant 1.000000e+00 : f32
    %149 = vector.broadcast %cst_46 : f32 to vector<8x32xf32>
    %150 = arith.subf %149, %142 : vector<8x32xf32>
    %151 = arith.mulf %150, %148 : vector<8x32xf32>
    %152 = arith.mulf %142, %128 : vector<8x32xf32>
    %153 = arith.addf %151, %152 : vector<8x32xf32>
    %c48 = arith.constant 48 : index
    %c0_47 = arith.constant 0 : index
    %154 = vector.load %arg6[%c48, %c0_47] : memref<64x96xf32, #tpu.memory_space<vmem>>, vector<8x96xf32>
    %cst_48 = arith.constant dense<0.000000e+00> : vector<8x96xf32>
    %155 = tpu.matmul %153, %7, %cst_48 {dimension_numbers = #tpu.dot_dimension_numbers<[1], [0], [0], [1], [0, 0, 1, 1], [], []>} : vector<8x32xf32>, vector<32x96xf32>, vector<8x96xf32> -> vector<8x96xf32>
    %156 = vector.extract_strided_slice %154 {offsets = [0, 0], sizes = [8, 64], strides = [1, 1]} : vector<8x96xf32> to vector<8x64xf32>
    %157 = vector.extract_strided_slice %155 {offsets = [0, 0], sizes = [8, 64], strides = [1, 1]} : vector<8x96xf32> to vector<8x64xf32>
    %158 = arith.addf %156, %157 : vector<8x64xf32>
    %cst_49 = arith.constant 5.000000e-01 : f32
    %159 = vector.broadcast %cst_49 : f32 to vector<8x64xf32>
    %160 = arith.mulf %159, %158 : vector<8x64xf32>
    %161 = math.tanh %160 : vector<8x64xf32>
    %cst_50 = arith.constant 1.000000e+00 : f32
    %162 = vector.broadcast %cst_50 : f32 to vector<8x64xf32>
    %163 = arith.addf %161, %162 : vector<8x64xf32>
    %cst_51 = arith.constant 5.000000e-01 : f32
    %164 = vector.broadcast %cst_51 : f32 to vector<8x64xf32>
    %165 = arith.mulf %164, %163 : vector<8x64xf32>
    %166 = vector.extract_strided_slice %165 {offsets = [0, 0], sizes = [8, 32], strides = [1, 1]} : vector<8x64xf32> to vector<8x32xf32>
    %167 = vector.extract_strided_slice %165 {offsets = [0, 32], sizes = [8, 32], strides = [1, 1]} : vector<8x64xf32> to vector<8x32xf32>
    %168 = vector.extract_strided_slice %154 {offsets = [0, 64], sizes = [8, 32], strides = [1, 1]} : vector<8x96xf32> to vector<8x32xf32>
    %169 = vector.extract_strided_slice %155 {offsets = [0, 64], sizes = [8, 32], strides = [1, 1]} : vector<8x96xf32> to vector<8x32xf32>
    %170 = arith.addf %169, %10 : vector<8x32xf32>
    %171 = arith.mulf %166, %170 : vector<8x32xf32>
    %172 = arith.addf %168, %171 : vector<8x32xf32>
    %173 = math.tanh %172 : vector<8x32xf32>
    %cst_52 = arith.constant 1.000000e+00 : f32
    %174 = vector.broadcast %cst_52 : f32 to vector<8x32xf32>
    %175 = arith.subf %174, %167 : vector<8x32xf32>
    %176 = arith.mulf %175, %173 : vector<8x32xf32>
    %177 = arith.mulf %167, %153 : vector<8x32xf32>
    %178 = arith.addf %176, %177 : vector<8x32xf32>
    %c56 = arith.constant 56 : index
    %c0_53 = arith.constant 0 : index
    %179 = vector.load %arg6[%c56, %c0_53] : memref<64x96xf32, #tpu.memory_space<vmem>>, vector<8x96xf32>
    %cst_54 = arith.constant dense<0.000000e+00> : vector<8x96xf32>
    %180 = tpu.matmul %178, %7, %cst_54 {dimension_numbers = #tpu.dot_dimension_numbers<[1], [0], [0], [1], [0, 0, 1, 1], [], []>} : vector<8x32xf32>, vector<32x96xf32>, vector<8x96xf32> -> vector<8x96xf32>
    %181 = vector.extract_strided_slice %179 {offsets = [0, 0], sizes = [8, 64], strides = [1, 1]} : vector<8x96xf32> to vector<8x64xf32>
    %182 = vector.extract_strided_slice %180 {offsets = [0, 0], sizes = [8, 64], strides = [1, 1]} : vector<8x96xf32> to vector<8x64xf32>
    %183 = arith.addf %181, %182 : vector<8x64xf32>
    %cst_55 = arith.constant 5.000000e-01 : f32
    %184 = vector.broadcast %cst_55 : f32 to vector<8x64xf32>
    %185 = arith.mulf %184, %183 : vector<8x64xf32>
    %186 = math.tanh %185 : vector<8x64xf32>
    %cst_56 = arith.constant 1.000000e+00 : f32
    %187 = vector.broadcast %cst_56 : f32 to vector<8x64xf32>
    %188 = arith.addf %186, %187 : vector<8x64xf32>
    %cst_57 = arith.constant 5.000000e-01 : f32
    %189 = vector.broadcast %cst_57 : f32 to vector<8x64xf32>
    %190 = arith.mulf %189, %188 : vector<8x64xf32>
    %191 = vector.extract_strided_slice %190 {offsets = [0, 0], sizes = [8, 32], strides = [1, 1]} : vector<8x64xf32> to vector<8x32xf32>
    %192 = vector.extract_strided_slice %190 {offsets = [0, 32], sizes = [8, 32], strides = [1, 1]} : vector<8x64xf32> to vector<8x32xf32>
    %193 = vector.extract_strided_slice %179 {offsets = [0, 64], sizes = [8, 32], strides = [1, 1]} : vector<8x96xf32> to vector<8x32xf32>
    %194 = vector.extract_strided_slice %180 {offsets = [0, 64], sizes = [8, 32], strides = [1, 1]} : vector<8x96xf32> to vector<8x32xf32>
    %195 = arith.addf %194, %10 : vector<8x32xf32>
    %196 = arith.mulf %191, %195 : vector<8x32xf32>
    %197 = arith.addf %193, %196 : vector<8x32xf32>
    %198 = math.tanh %197 : vector<8x32xf32>
    %cst_58 = arith.constant 1.000000e+00 : f32
    %199 = vector.broadcast %cst_58 : f32 to vector<8x32xf32>
    %200 = arith.subf %199, %192 : vector<8x32xf32>
    %201 = arith.mulf %200, %198 : vector<8x32xf32>
    %202 = arith.mulf %192, %178 : vector<8x32xf32>
    %203 = arith.addf %201, %202 : vector<8x32xf32>
    %c0_59 = arith.constant 0 : index
    %c0_60 = arith.constant 0 : index
    %204 = vector.load %arg5[%c0_59, %c0_60] : memref<8x32xf32, #tpu.memory_space<vmem>>, vector<8x32xf32>
    tpu.vector_store %arg5[%c0_59, %c0_60], %203 {strides = array<i32>} : memref<8x32xf32, #tpu.memory_space<vmem>>, vector<8x32xf32>,
    return
  }
}

</mosaic_0001>

<llo_original>
// kernel: tpu_custom_call.1
$region0: #{tpu_custom_call.1}
  #allocation0 [shape = 'u32[]', space=smem, size = 0x4, offset = 0x4, fixed_abs, tag = 'smem constant byte address 0x4 - core index']
  #allocation1 [shape = 'u32[144,128]{1,0:T(1,128)}', space=vmem, size = 0x12000, scoped, tag = 'internal scratch']
  #allocation2 [shape = 'f32[64,96]{1,0:T(8,128)}', space=vmem, size = 0x8000, scoped, tag = 'scratch operand']
  %s0 = inlined_call_operand.vmem [shape: f32[64,16], index: 0, kind: input, shape index: {}]
  %s1 = inlined_call_operand.vmem [shape: f32[16,96], index: 1, kind: input, shape index: {}]
  %s2 = inlined_call_operand.vmem [shape: f32[32,96], index: 2, kind: input, shape index: {}]
  %s3 = inlined_call_operand.vmem [shape: f32[1,96], index: 3, kind: input, shape index: {}]
  %s4 = inlined_call_operand.vmem [shape: f32[1,32], index: 4, kind: input, shape index: {}]
  %s5 = inlined_call_operand.hbm [shape: f32[8,32], index: 5, kind: output, shape index: {}]
  %s6 = sld [smem:[#allocation0]]
  $region30: #{tpu_custom_call.1} parent=0
    _
  %s8 = ssub.s32 1, %s6
  %s9 = scalar_select 0, %s8, %s6
  $region1: #{tpu_custom_call.1} parent=0
    #allocation3 [shape = 'u8[4096]{0}', space=vmem, size = 0x1000, scoped, tag = 'output window, operand 0, single buffered']
    #allocation4 [shape = 's32[1]{0}', space=sflag, size = 0x4, scoped, tag = 'scoped memory for tpu_custom_call.1']
    %10 = vsyncpa [#allocation4], 0
    // Predicated region
    $region2: #{tpu_custom_call.1} parent=1 // pred_check
      _
    $region3: #{tpu_custom_call.1} parent=1 // pred_check_branch
      %12 = sbr.rel (0) target = $region5
    $region4: #{tpu_custom_call.1} parent=1 // pred_region
      _
    $region5: #{tpu_custom_call.1} parent=1 // pred_fallthru
      _
    // Predicated region
    $region6: #{tpu_custom_call.1} parent=1 // pred_check
      _
    $region7: #{tpu_custom_call.1} parent=1 // pred_check_branch
      %14 = sbr.rel (0) target = $region9
    $region8: #{tpu_custom_call.1} parent=1 // pred_region
      _
    $region9: #{tpu_custom_call.1} parent=1 // pred_fallthru
      _
    // Predicated region
    $region10: #{tpu_custom_call.1} parent=1 // pred_check
      _
    $region11: #{tpu_custom_call.1} parent=1 // pred_check_branch
      %16 = sbr.rel (0) target = $region13
    $region12: #{tpu_custom_call.1} parent=1 // pred_region
      _
    $region13: #{tpu_custom_call.1} parent=1 // pred_fallthru
      _
    // Predicated region
    $region14: #{tpu_custom_call.1} parent=1 // pred_check
      _
    $region15: #{tpu_custom_call.1} parent=1 // pred_check_branch
      %18 = sbr.rel (0) target = $region17
    $region16: #{tpu_custom_call.1} parent=1 // pred_region
      _
    $region17: #{tpu_custom_call.1} parent=1 // pred_fallthru
      _
    // Predicated region
    $region18: #{tpu_custom_call.1} parent=1 // pred_check
      _
    $region19: #{tpu_custom_call.1} parent=1 // pred_check_branch
      %20 = sbr.rel (0) target = $region21
    $region20: #{tpu_custom_call.1} parent=1 // pred_region
      _
    $region21: #{tpu_custom_call.1} parent=1 // pred_fallthru
      _
    %v21 = vld [vmem:[%s0] sm:$0xff]
    %v22 = vld [vmem:[%s0 + $0x8] sm:$0xff]
    %v23 = vld [vmem:[%s0 + $0x10] sm:$0xff]
    %v24 = vld [vmem:[%s0 + $0x18] sm:$0xff]
    %v25 = vld [vmem:[%s0 + $0x20] sm:$0xff]
    %v26 = vld [vmem:[%s0 + $0x28] sm:$0xff]
    %v27 = vld [vmem:[%s0 + $0x30] sm:$0xff]
    %v28 = vld [vmem:[%s0 + $0x38] sm:$0xff]
    %v29 = vld [vmem:[%s1] sm:$0xff]
    %v30 = vld [vmem:[%s1 + $0x8] sm:$0xff]
    %v31 = vld [vmem:[%s3] sm:$0x1]
    %v33 = vlaneseq
    %v34 = vshrl.u32 %v33, 7
    %v35 = vsub.s32 0, %v34
    %v36 = vrot.slane %v31, %v35
    %vm38 = vcmask 130048
    %v40 = vsel %vm38, %v21, 0
    %v43 = vsel %vm38, %v22, 0
    %v46 = vsel %vm38, %v23, 0
    %v49 = vsel %vm38, %v24, 0
    %v52 = vsel %vm38, %v25, 0
    %v55 = vsel %vm38, %v26, 0
    %v58 = vsel %vm38, %v27, 0
    %v61 = vsel %vm38, %v28, 0
    %63 = vmatprep.subr.mxu0 0.0
    %64 = vmatpush1.msra.mxu0 %v29
    %65 = vmatprep.subr.mxu0 0.0
    %66 = vmatpush1.msra.mxu0 %v30
    %67 = vmatprep.subr.mxu0 0.0
    %68 = vmatpush1.msra.mxu0 0.0
    %69 = vmatprep.subr.mxu0 0.0
    %70 = vmatpush1.msra.mxu0 0.0
    %71 = vmatprep.subr.mxu0 0.0
    %72 = vmatpush1.msra.mxu0 0.0
    %73 = vmatprep.subr.mxu0 0.0
    %74 = vmatpush1.msra.mxu0 0.0
    %75 = vmatprep.subr.mxu0 0.0
    %76 = vmatpush1.msra.mxu0 0.0
    %77 = vmatprep.subr.mxu0 0.0
    %78 = vmatpush1.msra.mxu0 0.0
    %79 = vmatprep.subr.mxu0 0.0
    %80 = vmatpush1.msra.mxu0 0.0
    %81 = vmatprep.subr.mxu0 0.0
    %82 = vmatpush1.msra.mxu0 0.0
    %83 = vmatprep.subr.mxu0 0.0
    %84 = vmatpush1.msra.mxu0 0.0
    %85 = vmatprep.subr.mxu0 0.0
    %86 = vmatpush1.msra.mxu0 0.0
    %87 = vmatprep.subr.mxu0 0.0
    %88 = vmatpush1.msra.mxu0 0.0
    %89 = vmatprep.subr.mxu0 0.0
    %90 = vmatpush1.msra.mxu0 0.0
    %91 = vmatprep.subr.mxu0 0.0
    %92 = vmatpush1.msra.mxu0 0.0
    %93 = vmatprep.subr.mxu0 0.0
    %94 = vmatpush1.msra.mxu0 0.0
    %95 = vmatprep.subr.mxu0 0.0
    %96 = vmatpush1.msra.mxu0 0.0
    %97 = vmatprep.subr.mxu0 0.0
    %98 = vmatpush1.msra.mxu0 0.0
    %99 = vmatprep.subr.mxu0 0.0
    %100 = vmatpush1.msra.mxu0 0.0
    %101 = vmatprep.subr.mxu0 0.0
    %102 = vmatpush1.msra.mxu0 0.0
    %103 = vmatprep.subr.mxu0 0.0
    %104 = vmatpush1.msra.mxu0 0.0
    %105 = vmatprep.subr.mxu0 0.0
    %106 = vmatpush1.msra.mxu0 0.0
    %107 = vmatprep.subr.mxu0 0.0
    %108 = vmatpush1.msra.mxu0 0.0
    %109 = vmatprep.subr.mxu0 0.0
    %110 = vmatpush1.msra.mxu0 0.0
    %111 = vmatprep.subr.mxu0 0.0
    %112 = vmatpush1.msra.mxu0 0.0
    %113 = vmatprep.subr.mxu0 0.0
    %114 = vmatpush1.msra.mxu0 0.0
    %115 = vmatprep.subr.mxu0 0.0
    %116 = vmatpush1.msra.mxu0 0.0
    %117 = vmatprep.subr.mxu0 0.0
    %118 = vmatpush1.msra.mxu0 0.0
    %119 = vmatprep.subr.mxu0 0.0
    %120 = vmatpush1.msra.mxu0 0.0
    %121 = vmatprep.subr.mxu0 0.0
    %122 = vmatpush1.msra.mxu0 0.0
    %123 = vmatprep.subr.mxu0 0.0
    %124 = vmatpush1.msra.mxu0 0.0
    %125 = vmatprep.subr.mxu0 0.0
    %126 = vmatpush1.msra.mxu0 0.0
    %127 = vmatprep.mubr.f32.mxu0 0.0
    %128 = vmatmul.mubr.f32.gmra.mrb[0].mxu0 %v40
    %v129 = vpop.f32.mrb[0].mxu0
    %v130 = vadd.f32 %v36, %v129
    %v131 = vpop.f32.mrb[0].mxu0
    %132 = vmatprep.mubr.f32.mxu0 0.0
    %133 = vmatmul.mubr.f32.gmra.mrb[0].mxu0 %v43
    %v134 = vpop.f32.mrb[0].mxu0
    %v135 = vadd.f32 %v36, %v134
    %v136 = vpop.f32.mrb[0].mxu0
    %137 = vmatprep.mubr.f32.mxu0 0.0
    %138 = vmatmul.mubr.f32.gmra.mrb[0].mxu0 %v46
    %v139 = vpop.f32.mrb[0].mxu0
    %v140 = vadd.f32 %v36, %v139
    %v141 = vpop.f32.mrb[0].mxu0
    %142 = vmatprep.mubr.f32.mxu0 0.0
    %143 = vmatmul.mubr.f32.gmra.mrb[0].mxu0 %v49
    %v144 = vpop.f32.mrb[0].mxu0
    %v145 = vadd.f32 %v36, %v144
    %v146 = vpop.f32.mrb[0].mxu0
    %147 = vmatprep.mubr.f32.mxu0 0.0
    %148 = vmatmul.mubr.f32.gmra.mrb[0].mxu0 %v52
    %v149 = vpop.f32.mrb[0].mxu0
    %v150 = vadd.f32 %v36, %v149
    %v151 = vpop.f32.mrb[0].mxu0
    %152 = vmatprep.mubr.f32.mxu0 0.0
    %153 = vmatmul.mubr.f32.gmra.mrb[0].mxu0 %v55
    %v154 = vpop.f32.mrb[0].mxu0
    %v155 = vadd.f32 %v36, %v154
    %v156 = vpop.f32.mrb[0].mxu0
    %157 = vmatprep.mubr.f32.mxu0 0.0
    %158 = vmatmul.mubr.f32.gmra.mrb[0].mxu0 %v58
    %v159 = vpop.f32.mrb[0].mxu0
    %v160 = vadd.f32 %v36, %v159
    %v161 = vpop.f32.mrb[0].mxu0
    %162 = vmatprep.mubr.f32.mxu0 0.0
    %163 = vmatmul.mubr.f32.gmra.mrb[0].mxu0 %v61
    %v164 = vpop.f32.mrb[0].mxu0
    %v165 = vadd.f32 %v36, %v164
    %v166 = vpop.f32.mrb[0].mxu0
    %167 = vdwg.mxu0
    %vm168 = vcmask 785408
    %169 = vst.msk [vmem:[#allocation2] sm:$0xff] %vm168, %v130
    %170 = vst.msk [vmem:[#allocation2 + $0x8] sm:$0xff] %vm168, %v135
    %171 = vst.msk [vmem:[#allocation2 + $0x10] sm:$0xff] %vm168, %v140
    %172 = vst.msk [vmem:[#allocation2 + $0x18] sm:$0xff] %vm168, %v145
    %173 = vst.msk [vmem:[#allocation2 + $0x20] sm:$0xff] %vm168, %v150
    %174 = vst.msk [vmem:[#allocation2 + $0x28] sm:$0xff] %vm168, %v155
    %175 = vst.msk [vmem:[#allocation2 + $0x30] sm:$0xff] %vm168, %v160
    %176 = vst.msk [vmem:[#allocation2 + $0x38] sm:$0xff] %vm168, %v165
    %v177 = vld [vmem:[%s2] sm:$0xff]
    %v178 = vld [vmem:[%s2 + $0x8] sm:$0xff]
    %v179 = vld [vmem:[%s2 + $0x10] sm:$0xff]
    %v180 = vld [vmem:[%s2 + $0x18] sm:$0xff]
    %v181 = vld [vmem:[%s4] sm:$0x1]
    %v183 = vlaneseq
    %v184 = vshrl.u32 %v183, 7
    %v185 = vsub.s32 0, %v184
    %v186 = vrot.slane %v181, %v185
    %v188 = vld [vmem:[#allocation2] sm:$0xff]
    %v189 = vmul.f32 %v188, 0.5
    %v190 = vtanh.pop %v189
    %v191 = vadd.f32 %v190, 1.0
    %v192 = vmul.f32 %v191, 0.5
    %v193 = vmul.f32 %v192, %v186
    %195 = vrot.lane.b32.xlu0 %v193, 64
    %v196 = vpop.permute.xlu0 %195
    %v198 = vadd.f32 %v188, %v196
    %v199 = vtanh.pop %v198
    %v200 = vsub.f32 1.0, %v192
    %202 = vrot.lane.b32.xlu0 %v199, 96
    %v203 = vpop.permute.xlu0 %202
    %v205 = vmul.f32 %v200, %v203
    %v206 = vld [vmem:[#allocation2 + $0x8] sm:$0xff]
    %208 = vrot.lane.b32.xlu0 %v205, 96
    %v209 = vpop.permute.xlu0 %208
    %vm210 = vcmask 261120
    %v211 = vsel %vm210, %v209, 0
    %213 = vmatprep.subr.mxu0 0.0
    %214 = vmatpush1.msra.mxu0 %v177
    %215 = vmatprep.subr.mxu0 0.0
    %216 = vmatpush1.msra.mxu0 %v178
    %217 = vmatprep.subr.mxu0 0.0
    %218 = vmatpush1.msra.mxu0 %v179
    %219 = vmatprep.subr.mxu0 0.0
    %220 = vmatpush1.msra.mxu0 %v180
    %221 = vmatprep.subr.mxu0 0.0
    %222 = vmatpush1.msra.mxu0 0.0
    %223 = vmatprep.subr.mxu0 0.0
    %224 = vmatpush1.msra.mxu0 0.0
    %225 = vmatprep.subr.mxu0 0.0
    %226 = vmatpush1.msra.mxu0 0.0
    %227 = vmatprep.subr.mxu0 0.0
    %228 = vmatpush1.msra.mxu0 0.0
    %229 = vmatprep.subr.mxu0 0.0
    %230 = vmatpush1.msra.mxu0 0.0
    %231 = vmatprep.subr.mxu0 0.0
    %232 = vmatpush1.msra.mxu0 0.0
    %233 = vmatprep.subr.mxu0 0.0
    %234 = vmatpush1.msra.mxu0 0.0
    %235 = vmatprep.subr.mxu0 0.0
    %236 = vmatpush1.msra.mxu0 0.0
    %237 = vmatprep.subr.mxu0 0.0
    %238 = vmatpush1.msra.mxu0 0.0
    %239 = vmatprep.subr.mxu0 0.0
    %240 = vmatpush1.msra.mxu0 0.0
    %241 = vmatprep.subr.mxu0 0.0
    %242 = vmatpush1.msra.mxu0 0.0
    %243 = vmatprep.subr.mxu0 0.0
    %244 = vmatpush1.msra.mxu0 0.0
    %245 = vmatprep.subr.mxu0 0.0
    %246 = vmatpush1.msra.mxu0 0.0
    %247 = vmatprep.subr.mxu0 0.0
    %248 = vmatpush1.msra.mxu0 0.0
    %249 = vmatprep.subr.mxu0 0.0
    %250 = vmatpush1.msra.mxu0 0.0
    %251 = vmatprep.subr.mxu0 0.0
    %252 = vmatpush1.msra.mxu0 0.0
    %253 = vmatprep.subr.mxu0 0.0
    %254 = vmatpush1.msra.mxu0 0.0
    %255 = vmatprep.subr.mxu0 0.0
    %256 = vmatpush1.msra.mxu0 0.0
    %257 = vmatprep.subr.mxu0 0.0
    %258 = vmatpush1.msra.mxu0 0.0
    %259 = vmatprep.subr.mxu0 0.0
    %260 = vmatpush1.msra.mxu0 0.0
    %261 = vmatprep.subr.mxu0 0.0
    %262 = vmatpush1.msra.mxu0 0.0
    %263 = vmatprep.subr.mxu0 0.0
    %264 = vmatpush1.msra.mxu0 0.0
    %265 = vmatprep.subr.mxu0 0.0
    %266 = vmatpush1.msra.mxu0 0.0
    %267 = vmatprep.subr.mxu0 0.0
    %268 = vmatpush1.msra.mxu0 0.0
    %269 = vmatprep.subr.mxu0 0.0
    %270 = vmatpush1.msra.mxu0 0.0
    %271 = vmatprep.subr.mxu0 0.0
    %272 = vmatpush1.msra.mxu0 0.0
    %273 = vmatprep.subr.mxu0 0.0
    %274 = vmatpush1.msra.mxu0 0.0
    %275 = vmatprep.subr.mxu0 0.0
    %276 = vmatpush1.msra.mxu0 0.0
    %277 = vmatprep.mubr.f32.mxu0 0.0
    %278 = vmatmul.mubr.f32.gmra.mrb[0].mxu0 %v211
    %v279 = vpop.f32.mrb[0].mxu0
    %v280 = vadd.f32 0.0, %v279
    %v281 = vpop.f32.mrb[0].mxu0
    %282 = vdwg.mxu0
    %v283 = vadd.f32 %v206, %v280
    %v284 = vmul.f32 %v283, 0.5
    %v285 = vtanh.pop %v284
    %v286 = vadd.f32 %v285, 1.0
    %v287 = vmul.f32 %v286, 0.5
    %288 = vrot.lane.b32.xlu0 %v186, 64
    %v289 = vpop.permute.xlu0 %288
    %v291 = vadd.f32 %v280, %v289
    %293 = vrot.lane.b32.xlu0 %v291, 64
    %v294 = vpop.permute.xlu0 %293
    %v296 = vmul.f32 %v287, %v294
    %298 = vrot.lane.b32.xlu0 %v296, 64
    %v299 = vpop.permute.xlu0 %298
    %v301 = vadd.f32 %v206, %v299
    %v302 = vtanh.pop %v301
    %v303 = vsub.f32 1.0, %v287
    %305 = vrot.lane.b32.xlu0 %v302, 96
    %v306 = vpop.permute.xlu0 %305
    %v308 = vmul.f32 %v303, %v306
    %v309 = vmul.f32 %v287, %v205
    %v310 = vadd.f32 %v308, %v309
    %v311 = vld [vmem:[#allocation2 + $0x10] sm:$0xff]
    %313 = vrot.lane.b32.xlu0 %v310, 96
    %v314 = vpop.permute.xlu0 %313
    %v315 = vsel %vm210, %v314, 0
    %317 = vmatprep.subr.mxu0 0.0
    %318 = vmatpush1.msra.mxu0 %v177
    %319 = vmatprep.subr.mxu0 0.0
    %320 = vmatpush1.msra.mxu0 %v178
    %321 = vmatprep.subr.mxu0 0.0
    %322 = vmatpush1.msra.mxu0 %v179
    %323 = vmatprep.subr.mxu0 0.0
    %324 = vmatpush1.msra.mxu0 %v180
    %325 = vmatprep.subr.mxu0 0.0
    %326 = vmatpush1.msra.mxu0 0.0
    %327 = vmatprep.subr.mxu0 0.0
    %328 = vmatpush1.msra.mxu0 0.0
    %329 = vmatprep.subr.mxu0 0.0
    %330 = vmatpush1.msra.mxu0 0.0
    %331 = vmatprep.subr.mxu0 0.0
    %332 = vmatpush1.msra.mxu0 0.0
    %333 = vmatprep.subr.mxu0 0.0
    %334 = vmatpush1.msra.mxu0 0.0
    %335 = vmatprep.subr.mxu0 0.0
    %336 = vmatpush1.msra.mxu0 0.0
    %337 = vmatprep.subr.mxu0 0.0
    %338 = vmatpush1.msra.mxu0 0.0
    %339 = vmatprep.subr.mxu0 0.0
    %340 = vmatpush1.msra.mxu0 0.0
    %341 = vmatprep.subr.mxu0 0.0
    %342 = vmatpush1.msra.mxu0 0.0
    %343 = vmatprep.subr.mxu0 0.0
    %344 = vmatpush1.msra.mxu0 0.0
    %345 = vmatprep.subr.mxu0 0.0
    %346 = vmatpush1.msra.mxu0 0.0
    %347 = vmatprep.subr.mxu0 0.0
    %348 = vmatpush1.msra.mxu0 0.0
    %349 = vmatprep.subr.mxu0 0.0
    %350 = vmatpush1.msra.mxu0 0.0
    %351 = vmatprep.subr.mxu0 0.0
    %352 = vmatpush1.msra.mxu0 0.0
    %353 = vmatprep.subr.mxu0 0.0
    %354 = vmatpush1.msra.mxu0 0.0
    %355 = vmatprep.subr.mxu0 0.0
    %356 = vmatpush1.msra.mxu0 0.0
    %357 = vmatprep.subr.mxu0 0.0
    %358 = vmatpush1.msra.mxu0 0.0
    %359 = vmatprep.subr.mxu0 0.0
    %360 = vmatpush1.msra.mxu0 0.0
    %361 = vmatprep.subr.mxu0 0.0
    %362 = vmatpush1.msra.mxu0 0.0
    %363 = vmatprep.subr.mxu0 0.0
    %364 = vmatpush1.msra.mxu0 0.0
    %365 = vmatprep.subr.mxu0 0.0
    %366 = vmatpush1.msra.mxu0 0.0
    %367 = vmatprep.subr.mxu0 0.0
    %368 = vmatpush1.msra.mxu0 0.0
    %369 = vmatprep.subr.mxu0 0.0
    %370 = vmatpush1.msra.mxu0 0.0
    %371 = vmatprep.subr.mxu0 0.0
    %372 = vmatpush1.msra.mxu0 0.0
    %373 = vmatprep.subr.mxu0 0.0
    %374 = vmatpush1.msra.mxu0 0.0
    %375 = vmatprep.subr.mxu0 0.0
    %376 = vmatpush1.msra.mxu0 0.0
    %377 = vmatprep.subr.mxu0 0.0
    %378 = vmatpush1.msra.mxu0 0.0
    %379 = vmatprep.subr.mxu0 0.0
    %380 = vmatpush1.msra.mxu0 0.0
    %381 = vmatprep.mubr.f32.mxu0 0.0
    %382 = vmatmul.mubr.f32.gmra.mrb[0].mxu0 %v315
    %v383 = vpop.f32.mrb[0].mxu0
    %v384 = vadd.f32 0.0, %v383
    %v385 = vpop.f32.mrb[0].mxu0
    %386 = vdwg.mxu0
    %v387 = vadd.f32 %v311, %v384
    %v388 = vmul.f32 %v387, 0.5
    %v389 = vtanh.pop %v388
    %v390 = vadd.f32 %v389, 1.0
    %v391 = vmul.f32 %v390, 0.5
    %v392 = vadd.f32 %v384, %v289
    %394 = vrot.lane.b32.xlu0 %v392, 64
    %v395 = vpop.permute.xlu0 %394
    %v397 = vmul.f32 %v391, %v395
    %399 = vrot.lane.b32.xlu0 %v397, 64
    %v400 = vpop.permute.xlu0 %399
    %v402 = vadd.f32 %v311, %v400
    %v403 = vtanh.pop %v402
    %v404 = vsub.f32 1.0, %v391
    %406 = vrot.lane.b32.xlu0 %v403, 96
    %v407 = vpop.permute.xlu0 %406
    %v409 = vmul.f32 %v404, %v407
    %v410 = vmul.f32 %v391, %v310
    %v411 = vadd.f32 %v409, %v410
    %v412 = vld [vmem:[#allocation2 + $0x18] sm:$0xff]
    %414 = vrot.lane.b32.xlu0 %v411, 96
    %v415 = vpop.permute.xlu0 %414
    %v416 = vsel %vm210, %v415, 0
    %418 = vmatprep.subr.mxu0 0.0
    %419 = vmatpush1.msra.mxu0 %v177
    %420 = vmatprep.subr.mxu0 0.0
    %421 = vmatpush1.msra.mxu0 %v178
    %422 = vmatprep.subr.mxu0 0.0
    %423 = vmatpush1.msra.mxu0 %v179
    %424 = vmatprep.subr.mxu0 0.0
    %425 = vmatpush1.msra.mxu0 %v180
    %426 = vmatprep.subr.mxu0 0.0
    %427 = vmatpush1.msra.mxu0 0.0
    %428 = vmatprep.subr.mxu0 0.0
    %429 = vmatpush1.msra.mxu0 0.0
    %430 = vmatprep.subr.mxu0 0.0
    %431 = vmatpush1.msra.mxu0 0.0
    %432 = vmatprep.subr.mxu0 0.0
    %433 = vmatpush1.msra.mxu0 0.0
    %434 = vmatprep.subr.mxu0 0.0
    %435 = vmatpush1.msra.mxu0 0.0
    %436 = vmatprep.subr.mxu0 0.0
    %437 = vmatpush1.msra.mxu0 0.0
    %438 = vmatprep.subr.mxu0 0.0
    %439 = vmatpush1.msra.mxu0 0.0
    %440 = vmatprep.subr.mxu0 0.0
    %441 = vmatpush1.msra.mxu0 0.0
    %442 = vmatprep.subr.mxu0 0.0
    %443 = vmatpush1.msra.mxu0 0.0
    %444 = vmatprep.subr.mxu0 0.0
    %445 = vmatpush1.msra.mxu0 0.0
    %446 = vmatprep.subr.mxu0 0.0
    %447 = vmatpush1.msra.mxu0 0.0
    %448 = vmatprep.subr.mxu0 0.0
    %449 = vmatpush1.msra.mxu0 0.0
    %450 = vmatprep.subr.mxu0 0.0
    %451 = vmatpush1.msra.mxu0 0.0
    %452 = vmatprep.subr.mxu0 0.0
    %453 = vmatpush1.msra.mxu0 0.0
    %454 = vmatprep.subr.mxu0 0.0
    %455 = vmatpush1.msra.mxu0 0.0
    %456 = vmatprep.subr.mxu0 0.0
    %457 = vmatpush1.msra.mxu0 0.0
    %458 = vmatprep.subr.mxu0 0.0
    %459 = vmatpush1.msra.mxu0 0.0
    %460 = vmatprep.subr.mxu0 0.0
    %461 = vmatpush1.msra.mxu0 0.0
    %462 = vmatprep.subr.mxu0 0.0
    %463 = vmatpush1.msra.mxu0 0.0
    %464 = vmatprep.subr.mxu0 0.0
    %465 = vmatpush1.msra.mxu0 0.0
    %466 = vmatprep.subr.mxu0 0.0
    %467 = vmatpush1.msra.mxu0 0.0
    %468 = vmatprep.subr.mxu0 0.0
    %469 = vmatpush1.msra.mxu0 0.0
    %470 = vmatprep.subr.mxu0 0.0
    %471 = vmatpush1.msra.mxu0 0.0
    %472 = vmatprep.subr.mxu0 0.0
    %473 = vmatpush1.msra.mxu0 0.0
    %474 = vmatprep.subr.mxu0 0.0
    %475 = vmatpush1.msra.mxu0 0.0
    %476 = vmatprep.subr.mxu0 0.0
    %477 = vmatpush1.msra.mxu0 0.0
    %478 = vmatprep.subr.mxu0 0.0
    %479 = vmatpush1.msra.mxu0 0.0
    %480 = vmatprep.subr.mxu0 0.0
    %481 = vmatpush1.msra.mxu0 0.0
    %482 = vmatprep.mubr.f32.mxu0 0.0
    %483 = vmatmul.mubr.f32.gmra.mrb[0].mxu0 %v416
    %v484 = vpop.f32.mrb[0].mxu0
    %v485 = vadd.f32 0.0, %v484
    %v486 = vpop.f32.mrb[0].mxu0
    %487 = vdwg.mxu0
    %v488 = vadd.f32 %v412, %v485
    %v489 = vmul.f32 %v488, 0.5
    %v490 = vtanh.pop %v489
    %v491 = vadd.f32 %v490, 1.0
    %v492 = vmul.f32 %v491, 0.5
    %v493 = vadd.f32 %v485, %v289
    %495 = vrot.lane.b32.xlu0 %v493, 64
    %v496 = vpop.permute.xlu0 %495
    %v498 = vmul.f32 %v492, %v496
    %500 = vrot.lane.b32.xlu0 %v498, 64
    %v501 = vpop.permute.xlu0 %500
    %v503 = vadd.f32 %v412, %v501
    %v504 = vtanh.pop %v503
    %v505 = vsub.f32 1.0, %v492
    %507 = vrot.lane.b32.xlu0 %v504, 96
    %v508 = vpop.permute.xlu0 %507
    %v510 = vmul.f32 %v505, %v508
    %v511 = vmul.f32 %v492, %v411
    %v512 = vadd.f32 %v510, %v511
    %v513 = vld [vmem:[#allocation2 + $0x20] sm:$0xff]
    %515 = vrot.lane.b32.xlu0 %v512, 96
    %v516 = vpop.permute.xlu0 %515
    %v517 = vsel %vm210, %v516, 0
    %519 = vmatprep.subr.mxu0 0.0
    %520 = vmatpush1.msra.mxu0 %v177
    %521 = vmatprep.subr.mxu0 0.0
    %522 = vmatpush1.msra.mxu0 %v178
    %523 = vmatprep.subr.mxu0 0.0
    %524 = vmatpush1.msra.mxu0 %v179
    %525 = vmatprep.subr.mxu0 0.0
    %526 = vmatpush1.msra.mxu0 %v180
    %527 = vmatprep.subr.mxu0 0.0
    %528 = vmatpush1.msra.mxu0 0.0
    %529 = vmatprep.subr.mxu0 0.0
    %530 = vmatpush1.msra.mxu0 0.0
    %531 = vmatprep.subr.mxu0 0.0
    %532 = vmatpush1.msra.mxu0 0.0
    %533 = vmatprep.subr.mxu0 0.0
    %534 = vmatpush1.msra.mxu0 0.0
    %535 = vmatprep.subr.mxu0 0.0
    %536 = vmatpush1.msra.mxu0 0.0
    %537 = vmatprep.subr.mxu0 0.0
    %538 = vmatpush1.msra.mxu0 0.0
    %539 = vmatprep.subr.mxu0 0.0
    %540 = vmatpush1.msra.mxu0 0.0
    %541 = vmatprep.subr.mxu0 0.0
    %542 = vmatpush1.msra.mxu0 0.0
    %543 = vmatprep.subr.mxu0 0.0
    %544 = vmatpush1.msra.mxu0 0.0
    %545 = vmatprep.subr.mxu0 0.0
    %546 = vmatpush1.msra.mxu0 0.0
    %547 = vmatprep.subr.mxu0 0.0
    %548 = vmatpush1.msra.mxu0 0.0
    %549 = vmatprep.subr.mxu0 0.0
    %550 = vmatpush1.msra.mxu0 0.0
    %551 = vmatprep.subr.mxu0 0.0
    %552 = vmatpush1.msra.mxu0 0.0
    %553 = vmatprep.subr.mxu0 0.0
    %554 = vmatpush1.msra.mxu0 0.0
    %555 = vmatprep.subr.mxu0 0.0
    %556 = vmatpush1.msra.mxu0 0.0
    %557 = vmatprep.subr.mxu0 0.0
    %558 = vmatpush1.msra.mxu0 0.0
    %559 = vmatprep.subr.mxu0 0.0
    %560 = vmatpush1.msra.mxu0 0.0
    %561 = vmatprep.subr.mxu0 0.0
    %562 = vmatpush1.msra.mxu0 0.0
    %563 = vmatprep.subr.mxu0 0.0
    %564 = vmatpush1.msra.mxu0 0.0
    %565 = vmatprep.subr.mxu0 0.0
    %566 = vmatpush1.msra.mxu0 0.0
    %567 = vmatprep.subr.mxu0 0.0
    %568 = vmatpush1.msra.mxu0 0.0
    %569 = vmatprep.subr.mxu0 0.0
    %570 = vmatpush1.msra.mxu0 0.0
    %571 = vmatprep.subr.mxu0 0.0
    %572 = vmatpush1.msra.mxu0 0.0
    %573 = vmatprep.subr.mxu0 0.0
    %574 = vmatpush1.msra.mxu0 0.0
    %575 = vmatprep.subr.mxu0 0.0
    %576 = vmatpush1.msra.mxu0 0.0
    %577 = vmatprep.subr.mxu0 0.0
    %578 = vmatpush1.msra.mxu0 0.0
    %579 = vmatprep.subr.mxu0 0.0
    %580 = vmatpush1.msra.mxu0 0.0
    %581 = vmatprep.subr.mxu0 0.0
    %582 = vmatpush1.msra.mxu0 0.0
    %583 = vmatprep.mubr.f32.mxu0 0.0
    %584 = vmatmul.mubr.f32.gmra.mrb[0].mxu0 %v517
    %v585 = vpop.f32.mrb[0].mxu0
    %v586 = vadd.f32 0.0, %v585
    %v587 = vpop.f32.mrb[0].mxu0
    %588 = vdwg.mxu0
    %v589 = vadd.f32 %v513, %v586
    %v590 = vmul.f32 %v589, 0.5
    %v591 = vtanh.pop %v590
    %v592 = vadd.f32 %v591, 1.0
    %v593 = vmul.f32 %v592, 0.5
    %v594 = vadd.f32 %v586, %v289
    %596 = vrot.lane.b32.xlu0 %v594, 64
    %v597 = vpop.permute.xlu0 %596
    %v599 = vmul.f32 %v593, %v597
    %601 = vrot.lane.b32.xlu0 %v599, 64
    %v602 = vpop.permute.xlu0 %601
    %v604 = vadd.f32 %v513, %v602
    %v605 = vtanh.pop %v604
    %v606 = vsub.f32 1.0, %v593
    %608 = vrot.lane.b32.xlu0 %v605, 96
    %v609 = vpop.permute.xlu0 %608
    %v611 = vmul.f32 %v606, %v609
    %v612 = vmul.f32 %v593, %v512
    %v613 = vadd.f32 %v611, %v612
    %v614 = vld [vmem:[#allocation2 + $0x28] sm:$0xff]
    %616 = vrot.lane.b32.xlu0 %v613, 96
    %v617 = vpop.permute.xlu0 %616
    %v618 = vsel %vm210, %v617, 0
    %620 = vmatprep.subr.mxu0 0.0
    %621 = vmatpush1.msra.mxu0 %v177
    %622 = vmatprep.subr.mxu0 0.0
    %623 = vmatpush1.msra.mxu0 %v178
    %624 = vmatprep.subr.mxu0 0.0
    %625 = vmatpush1.msra.mxu0 %v179
    %626 = vmatprep.subr.mxu0 0.0
    %627 = vmatpush1.msra.mxu0 %v180
    %628 = vmatprep.subr.mxu0 0.0
    %629 = vmatpush1.msra.mxu0 0.0
    %630 = vmatprep.subr.mxu0 0.0
    %631 = vmatpush1.msra.mxu0 0.0
    %632 = vmatprep.subr.mxu0 0.0
    %633 = vmatpush1.msra.mxu0 0.0
    %634 = vmatprep.subr.mxu0 0.0
    %635 = vmatpush1.msra.mxu0 0.0
    %636 = vmatprep.subr.mxu0 0.0
    %637 = vmatpush1.msra.mxu0 0.0
    %638 = vmatprep.subr.mxu0 0.0
    %639 = vmatpush1.msra.mxu0 0.0
    %640 = vmatprep.subr.mxu0 0.0
    %641 = vmatpush1.msra.mxu0 0.0
    %642 = vmatprep.subr.mxu0 0.0
    %643 = vmatpush1.msra.mxu0 0.0
    %644 = vmatprep.subr.mxu0 0.0
    %645 = vmatpush1.msra.mxu0 0.0
    %646 = vmatprep.subr.mxu0 0.0
    %647 = vmatpush1.msra.mxu0 0.0
    %648 = vmatprep.subr.mxu0 0.0
    %649 = vmatpush1.msra.mxu0 0.0
    %650 = vmatprep.subr.mxu0 0.0
    %651 = vmatpush1.msra.mxu0 0.0
    %652 = vmatprep.subr.mxu0 0.0
    %653 = vmatpush1.msra.mxu0 0.0
    %654 = vmatprep.subr.mxu0 0.0
    %655 = vmatpush1.msra.mxu0 0.0
    %656 = vmatprep.subr.mxu0 0.0
    %657 = vmatpush1.msra.mxu0 0.0
    %658 = vmatprep.subr.mxu0 0.0
    %659 = vmatpush1.msra.mxu0 0.0
    %660 = vmatprep.subr.mxu0 0.0
    %661 = vmatpush1.msra.mxu0 0.0
    %662 = vmatprep.subr.mxu0 0.0
    %663 = vmatpush1.msra.mxu0 0.0
    %664 = vmatprep.subr.mxu0 0.0
    %665 = vmatpush1.msra.mxu0 0.0
    %666 = vmatprep.subr.mxu0 0.0
    %667 = vmatpush1.msra.mxu0 0.0
    %668 = vmatprep.subr.mxu0 0.0
    %669 = vmatpush1.msra.mxu0 0.0
    %670 = vmatprep.subr.mxu0 0.0
    %671 = vmatpush1.msra.mxu0 0.0
    %672 = vmatprep.subr.mxu0 0.0
    %673 = vmatpush1.msra.mxu0 0.0
    %674 = vmatprep.subr.mxu0 0.0
    %675 = vmatpush1.msra.mxu0 0.0
    %676 = vmatprep.subr.mxu0 0.0
    %677 = vmatpush1.msra.mxu0 0.0
    %678 = vmatprep.subr.mxu0 0.0
    %679 = vmatpush1.msra.mxu0 0.0
    %680 = vmatprep.subr.mxu0 0.0
    %681 = vmatpush1.msra.mxu0 0.0
    %682 = vmatprep.subr.mxu0 0.0
    %683 = vmatpush1.msra.mxu0 0.0
    %684 = vmatprep.mubr.f32.mxu0 0.0
    %685 = vmatmul.mubr.f32.gmra.mrb[0].mxu0 %v618
    %v686 = vpop.f32.mrb[0].mxu0
    %v687 = vadd.f32 0.0, %v686
    %v688 = vpop.f32.mrb[0].mxu0
    %689 = vdwg.mxu0
    %v690 = vadd.f32 %v614, %v687
    %v691 = vmul.f32 %v690, 0.5
    %v692 = vtanh.pop %v691
    %v693 = vadd.f32 %v692, 1.0
    %v694 = vmul.f32 %v693, 0.5
    %v695 = vadd.f32 %v687, %v289
    %697 = vrot.lane.b32.xlu0 %v695, 64
    %v698 = vpop.permute.xlu0 %697
    %v700 = vmul.f32 %v694, %v698
    %702 = vrot.lane.b32.xlu0 %v700, 64
    %v703 = vpop.permute.xlu0 %702
    %v705 = vadd.f32 %v614, %v703
    %v706 = vtanh.pop %v705
    %v707 = vsub.f32 1.0, %v694
    %709 = vrot.lane.b32.xlu0 %v706, 96
    %v710 = vpop.permute.xlu0 %709
    %v712 = vmul.f32 %v707, %v710
    %v713 = vmul.f32 %v694, %v613
    %v714 = vadd.f32 %v712, %v713
    %v715 = vld [vmem:[#allocation2 + $0x30] sm:$0xff]
    %717 = vrot.lane.b32.xlu0 %v714, 96
    %v718 = vpop.permute.xlu0 %717
    %v719 = vsel %vm210, %v718, 0
    %721 = vmatprep.subr.mxu0 0.0
    %722 = vmatpush1.msra.mxu0 %v177
    %723 = vmatprep.subr.mxu0 0.0
    %724 = vmatpush1.msra.mxu0 %v178
    %725 = vmatprep.subr.mxu0 0.0
    %726 = vmatpush1.msra.mxu0 %v179
    %727 = vmatprep.subr.mxu0 0.0
    %728 = vmatpush1.msra.mxu0 %v180
    %729 = vmatprep.subr.mxu0 0.0
    %730 = vmatpush1.msra.mxu0 0.0
    %731 = vmatprep.subr.mxu0 0.0
    %732 = vmatpush1.msra.mxu0 0.0
    %733 = vmatprep.subr.mxu0 0.0
    %734 = vmatpush1.msra.mxu0 0.0
    %735 = vmatprep.subr.mxu0 0.0
    %736 = vmatpush1.msra.mxu0 0.0
    %737 = vmatprep.subr.mxu0 0.0
    %738 = vmatpush1.msra.mxu0 0.0
    %739 = vmatprep.subr.mxu0 0.0
    %740 = vmatpush1.msra.mxu0 0.0
    %741 = vmatprep.subr.mxu0 0.0
    %742 = vmatpush1.msra.mxu0 0.0
    %743 = vmatprep.subr.mxu0 0.0
    %744 = vmatpush1.msra.mxu0 0.0
    %745 = vmatprep.subr.mxu0 0.0
    %746 = vmatpush1.msra.mxu0 0.0
    %747 = vmatprep.subr.mxu0 0.0
    %748 = vmatpush1.msra.mxu0 0.0
    %749 = vmatprep.subr.mxu0 0.0
    %750 = vmatpush1.msra.mxu0 0.0
    %751 = vmatprep.subr.mxu0 0.0
    %752 = vmatpush1.msra.mxu0 0.0
    %753 = vmatprep.subr.mxu0 0.0
    %754 = vmatpush1.msra.mxu0 0.0
    %755 = vmatprep.subr.mxu0 0.0
    %756 = vmatpush1.msra.mxu0 0.0
    %757 = vmatprep.subr.mxu0 0.0
    %758 = vmatpush1.msra.mxu0 0.0
    %759 = vmatprep.subr.mxu0 0.0
    %760 = vmatpush1.msra.mxu0 0.0
    %761 = vmatprep.subr.mxu0 0.0
    %762 = vmatpush1.msra.mxu0 0.0
    %763 = vmatprep.subr.mxu0 0.0
    %764 = vmatpush1.msra.mxu0 0.0
    %765 = vmatprep.subr.mxu0 0.0
    %766 = vmatpush1.msra.mxu0 0.0
    %767 = vmatprep.subr.mxu0 0.0
    %768 = vmatpush1.msra.mxu0 0.0
    %769 = vmatprep.subr.mxu0 0.0
    %770 = vmatpush1.msra.mxu0 0.0
    %771 = vmatprep.subr.mxu0 0.0
    %772 = vmatpush1.msra.mxu0 0.0
    %773 = vmatprep.subr.mxu0 0.0
    %774 = vmatpush1.msra.mxu0 0.0
    %775 = vmatprep.subr.mxu0 0.0
    %776 = vmatpush1.msra.mxu0 0.0
    %777 = vmatprep.subr.mxu0 0.0
    %778 = vmatpush1.msra.mxu0 0.0
    %779 = vmatprep.subr.mxu0 0.0
    %780 = vmatpush1.msra.mxu0 0.0
    %781 = vmatprep.subr.mxu0 0.0
    %782 = vmatpush1.msra.mxu0 0.0
    %783 = vmatprep.subr.mxu0 0.0
    %784 = vmatpush1.msra.mxu0 0.0
    %785 = vmatprep.mubr.f32.mxu0 0.0
    %786 = vmatmul.mubr.f32.gmra.mrb[0].mxu0 %v719
    %v787 = vpop.f32.mrb[0].mxu0
    %v788 = vadd.f32 0.0, %v787
    %v789 = vpop.f32.mrb[0].mxu0
    %790 = vdwg.mxu0
    %v791 = vadd.f32 %v715, %v788
    %v792 = vmul.f32 %v791, 0.5
    %v793 = vtanh.pop %v792
    %v794 = vadd.f32 %v793, 1.0
    %v795 = vmul.f32 %v794, 0.5
    %v796 = vadd.f32 %v788, %v289
    %798 = vrot.lane.b32.xlu0 %v796, 64
    %v799 = vpop.permute.xlu0 %798
    %v801 = vmul.f32 %v795, %v799
    %803 = vrot.lane.b32.xlu0 %v801, 64
    %v804 = vpop.permute.xlu0 %803
    %v806 = vadd.f32 %v715, %v804
    %v807 = vtanh.pop %v806
    %v808 = vsub.f32 1.0, %v795
    %810 = vrot.lane.b32.xlu0 %v807, 96
    %v811 = vpop.permute.xlu0 %810
    %v813 = vmul.f32 %v808, %v811
    %v814 = vmul.f32 %v795, %v714
    %v815 = vadd.f32 %v813, %v814
    %v816 = vld [vmem:[#allocation2 + $0x38] sm:$0xff]
    %818 = vrot.lane.b32.xlu0 %v815, 96
    %v819 = vpop.permute.xlu0 %818
    %v820 = vsel %vm210, %v819, 0
    %822 = vmatprep.subr.mxu0 0.0
    %823 = vmatpush1.msra.mxu0 %v177
    %824 = vmatprep.subr.mxu0 0.0
    %825 = vmatpush1.msra.mxu0 %v178
    %826 = vmatprep.subr.mxu0 0.0
    %827 = vmatpush1.msra.mxu0 %v179
    %828 = vmatprep.subr.mxu0 0.0
    %829 = vmatpush1.msra.mxu0 %v180
    %830 = vmatprep.subr.mxu0 0.0
    %831 = vmatpush1.msra.mxu0 0.0
    %832 = vmatprep.subr.mxu0 0.0
    %833 = vmatpush1.msra.mxu0 0.0
    %834 = vmatprep.subr.mxu0 0.0
    %835 = vmatpush1.msra.mxu0 0.0
    %836 = vmatprep.subr.mxu0 0.0
    %837 = vmatpush1.msra.mxu0 0.0
    %838 = vmatprep.subr.mxu0 0.0
    %839 = vmatpush1.msra.mxu0 0.0
    %840 = vmatprep.subr.mxu0 0.0
    %841 = vmatpush1.msra.mxu0 0.0
    %842 = vmatprep.subr.mxu0 0.0
    %843 = vmatpush1.msra.mxu0 0.0
    %844 = vmatprep.subr.mxu0 0.0
    %845 = vmatpush1.msra.mxu0 0.0
    %846 = vmatprep.subr.mxu0 0.0
    %847 = vmatpush1.msra.mxu0 0.0
    %848 = vmatprep.subr.mxu0 0.0
    %849 = vmatpush1.msra.mxu0 0.0
    %850 = vmatprep.subr.mxu0 0.0
    %851 = vmatpush1.msra.mxu0 0.0
    %852 = vmatprep.subr.mxu0 0.0
    %853 = vmatpush1.msra.mxu0 0.0
    %854 = vmatprep.subr.mxu0 0.0
    %855 = vmatpush1.msra.mxu0 0.0
    %856 = vmatprep.subr.mxu0 0.0
    %857 = vmatpush1.msra.mxu0 0.0
    %858 = vmatprep.subr.mxu0 0.0
    %859 = vmatpush1.msra.mxu0 0.0
    %860 = vmatprep.subr.mxu0 0.0
    %861 = vmatpush1.msra.mxu0 0.0
    %862 = vmatprep.subr.mxu0 0.0
    %863 = vmatpush1.msra.mxu0 0.0
    %864 = vmatprep.subr.mxu0 0.0
    %865 = vmatpush1.msra.mxu0 0.0
    %866 = vmatprep.subr.mxu0 0.0
    %867 = vmatpush1.msra.mxu0 0.0
    %868 = vmatprep.subr.mxu0 0.0
    %869 = vmatpush1.msra.mxu0 0.0
    %870 = vmatprep.subr.mxu0 0.0
    %871 = vmatpush1.msra.mxu0 0.0
    %872 = vmatprep.subr.mxu0 0.0
    %873 = vmatpush1.msra.mxu0 0.0
    %874 = vmatprep.subr.mxu0 0.0
    %875 = vmatpush1.msra.mxu0 0.0
    %876 = vmatprep.subr.mxu0 0.0
    %877 = vmatpush1.msra.mxu0 0.0
    %878 = vmatprep.subr.mxu0 0.0
    %879 = vmatpush1.msra.mxu0 0.0
    %880 = vmatprep.subr.mxu0 0.0
    %881 = vmatpush1.msra.mxu0 0.0
    %882 = vmatprep.subr.mxu0 0.0
    %883 = vmatpush1.msra.mxu0 0.0
    %884 = vmatprep.subr.mxu0 0.0
    %885 = vmatpush1.msra.mxu0 0.0
    %886 = vmatprep.mubr.f32.mxu0 0.0
    %887 = vmatmul.mubr.f32.gmra.mrb[0].mxu0 %v820
    %v888 = vpop.f32.mrb[0].mxu0
    %v889 = vadd.f32 0.0, %v888
    %v890 = vpop.f32.mrb[0].mxu0
    %891 = vdwg.mxu0
    %v892 = vadd.f32 %v816, %v889
    %v893 = vmul.f32 %v892, 0.5
    %v894 = vtanh.pop %v893
    %v895 = vadd.f32 %v894, 1.0
    %v896 = vmul.f32 %v895, 0.5
    %v897 = vadd.f32 %v889, %v289
    %899 = vrot.lane.b32.xlu0 %v897, 64
    %v900 = vpop.permute.xlu0 %899
    %v902 = vmul.f32 %v896, %v900
    %904 = vrot.lane.b32.xlu0 %v902, 64
    %v905 = vpop.permute.xlu0 %904
    %v907 = vadd.f32 %v816, %v905
    %v908 = vtanh.pop %v907
    %v909 = vsub.f32 1.0, %v896
    %911 = vrot.lane.b32.xlu0 %v908, 96
    %v912 = vpop.permute.xlu0 %911
    %v914 = vmul.f32 %v909, %v912
    %v915 = vmul.f32 %v896, %v815
    %v916 = vadd.f32 %v914, %v915
    %918 = vrot.lane.b32.xlu0 %v916, 96
    %v919 = vpop.permute.xlu0 %918
    %921 = vst.msk [vmem:[#allocation3] sm:$0xff] %vm210, %v919
    // Predicated region
    $region22: #{tpu_custom_call.1} parent=1 // pred_check
      _
    $region23: #{tpu_custom_call.1} parent=1 // pred_check_branch
      %923 = sbr.rel (0) target = $region25
    $region24: #{tpu_custom_call.1} parent=1 // pred_region
      %s925 = ssub.s32 128, 128
      %926 = vsyncadd [#allocation4], %s925
      %s928 = sshll.u32 [#allocation3], 4
      %s929 = int_to_ptr.vmem [resolvable:$true] %s928
      %931 = dma.vmem_to_hbm [thread:$0]  %s929, 128, %s5, [#allocation4]
    $region25: #{tpu_custom_call.1} parent=1 // pred_fallthru
      _
    // Predicated region
    $region26: #{tpu_custom_call.1} parent=1 // pred_check
      _
    $region27: #{tpu_custom_call.1} parent=1 // pred_check_branch
      %933 = sbr.rel (0) target = $region29
    $region28: #{tpu_custom_call.1} parent=1 // pred_region
      %934 = dma.done [#allocation4], 128
    $region29: #{tpu_custom_call.1} parent=1 // pred_fallthru
      _
    %935 = vsyncpa [#allocation4], 1

</llo_original>
